<compile_context>
chip_gen: v7x
topology: tpu7x:2x2x1
jax: 0.10.0
libtpu: 0.0.40
codegen_flags: <defaults>
</compile_context>

<pallas_src>
import jax
import jax.numpy as jnp
from jax.experimental import pallas as pl
from jax.experimental.pallas import tpu as pltpu

_BIG = 1e30
_TINY = 1e-38  # floor for masked softmax denominators (avoids log(0) -> NaN)


def _round_up(x, m):
    return (x + m - 1) // m * m


def _at_loss_kernel(logits_ref, labels_ref, loss_ref):
    x = logits_ref[...].astype(jnp.float32)   # [TB, C]
    y = labels_ref[...].astype(jnp.float32)   # [TB, C]

    # Single shared row-max / exp pass feeding both masked log-softmaxes.
    m = jnp.max(x, axis=-1, keepdims=True)    # [TB, 1]
    z = x - m
    e = jnp.exp(z)

    z0 = z[:, 0:1]                            # threshold class (class 0)
    e0 = e[:, 0:1]
    y0 = y[:, 0:1]

    pos_e = jnp.where(y > 0.0, e, 0.0)        # exp mass on label-positive classes
    neg_e = e - pos_e                         # exact complement: e on negatives, 0 on positives
    corr0 = jnp.where(y0 > 0.0, e0, 0.0)      # class 0 always counts as negative/threshold

    # {threshold} U positives  /  {threshold} U negatives
    s1 = jnp.sum(pos_e, axis=-1, keepdims=True) - corr0 + e0
    s2 = jnp.sum(neg_e, axis=-1, keepdims=True) + corr0
    lse1 = jnp.log(jnp.maximum(s1, _TINY))    # log-sum-exp relative to m
    lse2 = jnp.log(jnp.maximum(s2, _TINY))

    n_pos = jnp.sum(y, axis=-1, keepdims=True) - y0
    dot_pz = jnp.sum(y * z, axis=-1, keepdims=True) - y0 * z0

    loss1 = n_pos * lse1 - dot_pz             # -(log_softmax(logit1) * labels).sum
    loss2 = lse2 - z0                         # -(log_softmax(logit2) * th_label).sum
    loss_ref[...] = loss1 + loss2             # per-row loss, [TB, 1]


def at_loss(logits, labels, *, vmem_budget_bytes=44 * 1024 * 1024):
    """logits, labels: [B, C] arrays (class 0 = adaptive threshold).

    Streams the inputs in their native dtype; returns the scalar f32 ATLoss
    (mean over the batch).
    """
    B, C = logits.shape
    assert labels.shape == (B, C), (logits.shape, labels.shape)

    lg_isz = jnp.dtype(logits.dtype).itemsize
    lb_isz = jnp.dtype(labels.dtype).itemsize

    # Sublane multiple for the batch tile: 8 for 32-bit, 16 for 16-bit,
    # 32 for 8-bit input streams.
    sub = max(8, 8 * (4 // max(lg_isz, 1)), 8 * (4 // max(lb_isz, 1)))

    # Per-row VMEM cost of one grid step: double-buffered input streams plus a
    # generous allowance (~8 f32-sized copies) for the elementwise temporaries
    # Mosaic materializes (x/y upcasts, z, e, where-results).  Budget stays
    # well under v7x's 64 MiB/TC.
    per_row = 2 * C * (lg_isz + lb_isz) + 8 * C * 4 + 16
    tb_vmem = max(sub, (vmem_budget_bytes // per_row) // sub * sub)

    # Keep >= 4 grid steps when the batch allows it (feeds the pipeline and
    # lets v7x's two TensorCores split the "parallel" axis).
    tb_par = _round_up(max(1, -(-B // 4)), sub)

    tb = min(tb_vmem, tb_par)
    if tb >= B:
        tb = B                                # single full-extent block
    num_tiles = pl.cdiv(B, tb)

    blk = tb * C
    vmem_need = (2 * blk * (lg_isz + lb_isz)  # double-buffered input streams
                 + 8 * blk * 4                # f32 elementwise temporaries
                 + 4 * tb * 4                 # output blocks
                 + (2 << 20))                 # misc slack
    vmem_limit = int(min(max(vmem_need, 32 << 20), 60 << 20))

    per_row_loss = pl.pallas_call(
        _at_loss_kernel,
        out_shape=jax.ShapeDtypeStruct((B, 1), jnp.float32),
        grid=(num_tiles,),
        in_specs=[
            pl.BlockSpec((tb, C), lambda i: (i, 0)),
            pl.BlockSpec((tb, C), lambda i: (i, 0)),
        ],
        out_specs=pl.BlockSpec((tb, 1), lambda i: (i, 0)),
        compiler_params=pltpu.CompilerParams(
            dimension_semantics=("parallel",),
            vmem_limit_bytes=vmem_limit,
        ),
    )(logits, labels)

    return jnp.sum(per_row_loss) / jnp.float32(B)


def _at_loss_ref(logits, labels):
    # Pure-JAX reference mirroring the PyTorch module exactly.
    logits = logits.astype(jnp.float32)
    labels = labels.astype(jnp.float32)
    th_label = jnp.zeros_like(labels).at[:, 0].set(1.0)
    labels = labels.at[:, 0].set(0.0)
    p_mask = labels + th_label
    n_mask = 1.0 - labels
    logit1 = logits - (1.0 - p_mask) * _BIG
    logit2 = logits - (1.0 - n_mask) * _BIG
    loss1 = -jnp.sum(jax.nn.log_softmax(logit1, axis=-1) * labels, axis=1)
    loss2 = -jnp.sum(jax.nn.log_softmax(logit2, axis=-1) * th_label, axis=1)
    return jnp.mean(loss1 + loss2)


if __name__ == "__main__":
    key = jax.random.PRNGKey(0)
    k1, k2, k3, k4 = jax.random.split(key, 4)

    # Small demo shape matching the module: [batch, num_classes],
    # class 0 is the adaptive-threshold class.
    B, C = 8, 32
    logits = jax.random.normal(k1, (B, C), dtype=jnp.float32)
    labels = (jax.random.uniform(k2, (B, C)) < 0.25).astype(jnp.float32)

    loss = at_loss(logits, labels)
    jax.block_until_ready(loss)
    ref = _at_loss_ref(logits, labels)
    assert jnp.allclose(loss, ref, rtol=1e-5, atol=1e-5), (loss, ref)

    # Multi-tile path: B, C not multiples of 8 / 128, several grid tiles with a
    # partial last row-block and a non-128-aligned full-extent class axis.
    B2, C2 = 200, 200
    logits2 = jax.random.normal(k3, (B2, C2), dtype=jnp.float32)
    labels2 = (jax.random.uniform(k4, (B2, C2)) < 0.1).astype(jnp.float32)

    loss2 = at_loss(logits2, labels2)
    jax.block_until_ready(loss2)
    ref2 = _at_loss_ref(logits2, labels2)
    assert jnp.allclose(loss2, ref2, rtol=1e-4, atol=1e-4), (loss2, ref2)

    # Narrow-dtype streaming path: bf16 inputs, f32 math inside the kernel.
    logits3 = logits2.astype(jnp.bfloat16)
    labels3 = labels2.astype(jnp.bfloat16)
    loss3 = at_loss(logits3, labels3)
    jax.block_until_ready(loss3)
    ref3 = _at_loss_ref(logits3, labels3)
    assert jnp.allclose(loss3, ref3, rtol=1e-4, atol=1e-4), (loss3, ref3)

    print("KERNEL_OK")
</pallas_src>

<mosaic_0001>
module attributes {stable_mosaic.version = 11 : i64} {
  func.func @_at_loss_kernel(%arg0: i32, %arg1: memref<8x32xf32, #tpu.memory_space<vmem>>, %arg2: memref<8x32xf32, #tpu.memory_space<vmem>>, %arg3: memref<8x1xf32, #tpu.memory_space<vmem>>) attributes {dimension_semantics = [#tpu.dimension_semantics<parallel>], iteration_bounds = array<i64: 1>, scalar_prefetch = 0 : i64, scratch_operands = 0 : i64, tpu.core_type = #tpu.core_type<tc>, window_params = [{transform_indices = @transform_0, window_bounds = array<i64: 8, 32>}, {transform_indices = @transform_1, window_bounds = array<i64: 8, 32>}, {transform_indices = @transform_2, window_bounds = array<i64: 8, 1>}]} {
    %c0 = arith.constant 0 : index
    %c0_0 = arith.constant 0 : index
    %0 = vector.load %arg1[%c0, %c0_0] : memref<8x32xf32, #tpu.memory_space<vmem>>, vector<8x32xf32>
    %c0_1 = arith.constant 0 : index
    %c0_2 = arith.constant 0 : index
    %1 = vector.load %arg2[%c0_1, %c0_2] : memref<8x32xf32, #tpu.memory_space<vmem>>, vector<8x32xf32>
    %cst = arith.constant dense<0xFF800000> : vector<8xf32>
    %2 = vector.multi_reduction <maximumf>, %0, %cst [1] : vector<8x32xf32> to vector<8xf32>
    %3 = vector.shape_cast %2 : vector<8xf32> to vector<8x1xf32>
    %4 = vector.broadcast %3 : vector<8x1xf32> to vector<8x32xf32>
    %5 = arith.subf %0, %4 : vector<8x32xf32>
    %6 = math.exp %5 : vector<8x32xf32>
    %7 = vector.extract_strided_slice %5 {offsets = [0, 0], sizes = [8, 1], strides = [1, 1]} : vector<8x32xf32> to vector<8x1xf32>
    %8 = vector.extract_strided_slice %6 {offsets = [0, 0], sizes = [8, 1], strides = [1, 1]} : vector<8x32xf32> to vector<8x1xf32>
    %9 = vector.extract_strided_slice %1 {offsets = [0, 0], sizes = [8, 1], strides = [1, 1]} : vector<8x32xf32> to vector<8x1xf32>
    %cst_3 = arith.constant 0.000000e+00 : f32
    %10 = vector.broadcast %cst_3 : f32 to vector<8x32xf32>
    %11 = arith.cmpf ogt, %1, %10 : vector<8x32xf32>
    %cst_4 = arith.constant 0.000000e+00 : f32
    %12 = vector.broadcast %cst_4 : f32 to vector<8x32xf32>
    %13 = arith.select %11, %6, %12 : vector<8x32xi1>, vector<8x32xf32>
    %14 = arith.subf %6, %13 : vector<8x32xf32>
    %cst_5 = arith.constant 0.000000e+00 : f32
    %15 = vector.broadcast %cst_5 : f32 to vector<8x1xf32>
    %16 = arith.cmpf ogt, %9, %15 : vector<8x1xf32>
    %cst_6 = arith.constant 0.000000e+00 : f32
    %17 = vector.broadcast %cst_6 : f32 to vector<8x1xf32>
    %18 = arith.select %16, %8, %17 : vector<8x1xi1>, vector<8x1xf32>
    %cst_7 = arith.constant dense<0.000000e+00> : vector<8xf32>
    %19 = vector.multi_reduction <add>, %13, %cst_7 [1] : vector<8x32xf32> to vector<8xf32>
    %20 = vector.shape_cast %19 : vector<8xf32> to vector<8x1xf32>
    %21 = arith.subf %20, %18 : vector<8x1xf32>
    %22 = arith.addf %21, %8 : vector<8x1xf32>
    %cst_8 = arith.constant dense<0.000000e+00> : vector<8xf32>
    %23 = vector.multi_reduction <add>, %14, %cst_8 [1] : vector<8x32xf32> to vector<8xf32>
    %24 = vector.shape_cast %23 : vector<8xf32> to vector<8x1xf32>
    %25 = arith.addf %24, %18 : vector<8x1xf32>
    %cst_9 = arith.constant 9.99999935E-39 : f32
    %26 = vector.broadcast %cst_9 : f32 to vector<8x1xf32>
    %27 = arith.maximumf %22, %26 : vector<8x1xf32>
    %28 = math.log %27 : vector<8x1xf32>
    %cst_10 = arith.constant 9.99999935E-39 : f32
    %29 = vector.broadcast %cst_10 : f32 to vector<8x1xf32>
    %30 = arith.maximumf %25, %29 : vector<8x1xf32>
    %31 = math.log %30 : vector<8x1xf32>
    %cst_11 = arith.constant dense<0.000000e+00> : vector<8xf32>
    %32 = vector.multi_reduction <add>, %1, %cst_11 [1] : vector<8x32xf32> to vector<8xf32>
    %33 = vector.shape_cast %32 : vector<8xf32> to vector<8x1xf32>
    %34 = arith.subf %33, %9 : vector<8x1xf32>
    %35 = arith.mulf %1, %5 : vector<8x32xf32>
    %cst_12 = arith.constant dense<0.000000e+00> : vector<8xf32>
    %36 = vector.multi_reduction <add>, %35, %cst_12 [1] : vector<8x32xf32> to vector<8xf32>
    %37 = vector.shape_cast %36 : vector<8xf32> to vector<8x1xf32>
    %38 = arith.mulf %9, %7 : vector<8x1xf32>
    %39 = arith.subf %37, %38 : vector<8x1xf32>
    %40 = arith.mulf %34, %28 : vector<8x1xf32>
    %41 = arith.subf %40, %39 : vector<8x1xf32>
    %42 = arith.subf %31, %7 : vector<8x1xf32>
    %43 = arith.addf %41, %42 : vector<8x1xf32>
    %c0_13 = arith.constant 0 : index
    %c0_14 = arith.constant 0 : index
    %44 = vector.load %arg3[%c0_13, %c0_14] : memref<8x1xf32, #tpu.memory_space<vmem>>, vector<8x1xf32>
    tpu.vector_store %arg3[%c0_13, %c0_14], %43 {strides = array<i32>} : memref<8x1xf32, #tpu.memory_space<vmem>>, vector<8x1xf32>,
    return
  }
  func.func @transform_0(%arg0: i32) -> (i32, i32) {
    %c0_i32 = arith.constant 0 : i32
    %c0_i32_0 = arith.constant 0 : i32
    return %arg0, %c0_i32 : i32, i32
  }
  func.func @transform_1(%arg0: i32) -> (i32, i32) {
    %c0_i32 = arith.constant 0 : i32
    %c0_i32_0 = arith.constant 0 : i32
    return %arg0, %c0_i32 : i32, i32
  }
  func.func @transform_2(%arg0: i32) -> (i32, i32) {
    %c0_i32 = arith.constant 0 : i32
    %c0_i32_0 = arith.constant 0 : i32
    return %arg0, %c0_i32 : i32, i32
  }
}

</mosaic_0001>

<llo_original>
// kernel: tpu_custom_call.1
$region0: #{tpu_custom_call.1}
  #allocation0 [shape = 'u32[]', space=smem, size = 0x4, offset = 0x4, fixed_abs, tag = 'smem constant byte address 0x4 - core index']
  #allocation1 [shape = 'u32[144,128]{1,0:T(1,128)}', space=vmem, size = 0x12000, scoped, tag = 'internal scratch']
  %s0 = inlined_call_operand.hbm [shape: f32[8,32], index: 0, kind: input, shape index: {}]
  %s1 = inlined_call_operand.hbm [shape: f32[8,32], index: 1, kind: input, shape index: {}]
  %s2 = inlined_call_operand.vmem [shape: f32[8,1], index: 2, kind: output, shape index: {}]
  %s3 = sld [smem:[#allocation0]]
  $region26: #{tpu_custom_call.1} parent=0
    _
  %s5 = ssub.s32 1, %s3
  %s6 = scalar_select 0, %s5, %s3
  $region1: #{tpu_custom_call.1} parent=0
    #allocation2 [shape = 'u8[4096]{0}', space=vmem, size = 0x1000, scoped, tag = 'input window, operand 0, single buffered']
    #allocation3 [shape = 's32[1]{0}', space=sflag, size = 0x4, scoped, tag = 'scoped memory for tpu_custom_call.1']
    #allocation4 [shape = 'u8[4096]{0}', space=vmem, size = 0x1000, scoped, tag = 'input window, operand 1, single buffered']
    #allocation5 [shape = 's32[1]{0}', space=sflag, size = 0x4, scoped, tag = 'scoped memory for tpu_custom_call.1']
    %7 = vsyncpa [#allocation3], 0
    %8 = vsyncpa [#allocation5], 0
    // Predicated region
    $region2: #{tpu_custom_call.1} parent=1 // pred_check
      _
    $region3: #{tpu_custom_call.1} parent=1 // pred_check_branch
      %10 = sbr.rel (0) target = $region5
    $region4: #{tpu_custom_call.1} parent=1 // pred_region
      %s12 = ssub.s32 128, 128
      %13 = vsyncadd [#allocation3], %s12
      %s15 = sshll.u32 [#allocation2], 4
      %s16 = int_to_ptr.vmem [resolvable:$true] %s15
      %18 = dma.hbm_to_vmem [thread:$0]  %s0, 128, %s16, [#allocation3]
    $region5: #{tpu_custom_call.1} parent=1 // pred_fallthru
      _
    // Predicated region
    $region6: #{tpu_custom_call.1} parent=1 // pred_check
      _
    $region7: #{tpu_custom_call.1} parent=1 // pred_check_branch
      %20 = sbr.rel (0) target = $region9
    $region8: #{tpu_custom_call.1} parent=1 // pred_region
      %s22 = ssub.s32 128, 128
      %23 = vsyncadd [#allocation5], %s22
      %s25 = sshll.u32 [#allocation4], 4
      %s26 = int_to_ptr.vmem [resolvable:$true] %s25
      %28 = dma.hbm_to_vmem [thread:$0]  %s1, 128, %s26, [#allocation5]
    $region9: #{tpu_custom_call.1} parent=1 // pred_fallthru
      _
    // Predicated region
    $region10: #{tpu_custom_call.1} parent=1 // pred_check
      _
    $region11: #{tpu_custom_call.1} parent=1 // pred_check_branch
      %30 = sbr.rel (0) target = $region13
    $region12: #{tpu_custom_call.1} parent=1 // pred_region
      %31 = dma.done [#allocation3], 128
    $region13: #{tpu_custom_call.1} parent=1 // pred_fallthru
      _
    // Predicated region
    $region14: #{tpu_custom_call.1} parent=1 // pred_check
      _
    $region15: #{tpu_custom_call.1} parent=1 // pred_check_branch
      %33 = sbr.rel (0) target = $region17
    $region16: #{tpu_custom_call.1} parent=1 // pred_region
      %34 = dma.done [#allocation5], 128
    $region17: #{tpu_custom_call.1} parent=1 // pred_fallthru
      _
    %v35 = vld [vmem:[#allocation2] sm:$0xff]
    %v36 = vld [vmem:[#allocation4] sm:$0xff]
    %vm37 = vcmask 261120
    %v38 = vsel %vm37, %v35, -inf
    %39 = vmax.xlane.f32.xlu0 %v38
    %v40 = vpop.xlane.xlu0 %39
    %v41 = vsub.f32 %v35, %v40
    %v42 = vmul.f32 %v41, 1.442695
    %v43 = vpow.pop %v42
    %vm44 = vcmp.gt.f32.partialorder %v36, 0.0
    %v45 = vsel %vm44, %v43, 0.0
    %v46 = vsub.f32 %v43, %v45
    %v47 = vsel %vm37, %v45, 0.0
    %48 = vadd.xlane.f32.xlu0 %v47
    %v49 = vpop.xlane.xlu0 %48
    %v50 = vsub.f32 %v49, %v45
    %v51 = vadd.f32 %v50, %v43
    %v52 = vsel %vm37, %v46, 0.0
    %53 = vadd.xlane.f32.xlu0 %v52
    %v54 = vpop.xlane.xlu0 %53
    %v55 = vadd.f32 %v54, %v45
    %v56 = vmax.f32 %v51, 1e-38
    %v57 = vlog2.pop %v56
    %v58 = vmul.f32 %v57, 0.6931472
    %v59 = vmax.f32 %v55, 1e-38
    %v60 = vlog2.pop %v59
    %v61 = vmul.f32 %v60, 0.6931472
    %v62 = vsel %vm37, %v36, 0.0
    %63 = vadd.xlane.f32.xlu0 %v62
    %v64 = vpop.xlane.xlu0 %63
    %v65 = vsub.f32 %v64, %v36
    %v66 = vmul.f32 %v36, %v41
    %v67 = vsel %vm37, %v66, 0.0
    %68 = vadd.xlane.f32.xlu0 %v67
    %v69 = vpop.xlane.xlu0 %68
    %v70 = vsub.f32 %v69, %v66
    %v71 = vmul.f32 %v65, %v58
    %v72 = vsub.f32 %v71, %v70
    %v73 = vsub.f32 %v61, %v41
    %v74 = vadd.f32 %v72, %v73
    %vm75 = vcmask 7168
    %76 = vst.msk [vmem:[%s2] sm:$0xff] %vm75, %v74
    // Predicated region
    $region18: #{tpu_custom_call.1} parent=1 // pred_check
      _
    $region19: #{tpu_custom_call.1} parent=1 // pred_check_branch
      %78 = sbr.rel (0) target = $region21
    $region20: #{tpu_custom_call.1} parent=1 // pred_region
      _
    $region21: #{tpu_custom_call.1} parent=1 // pred_fallthru
      _
    // Predicated region
    $region22: #{tpu_custom_call.1} parent=1 // pred_check
      _
    $region23: #{tpu_custom_call.1} parent=1 // pred_check_branch
      %80 = sbr.rel (0) target = $region25
    $region24: #{tpu_custom_call.1} parent=1 // pred_region
      _
    $region25: #{tpu_custom_call.1} parent=1 // pred_fallthru
      _
    %81 = vsyncpa [#allocation3], 1
    %82 = vsyncpa [#allocation5], 1

</llo_original>
